<compile_context>
chip_gen: v6e
topology: v6e:2x2x1
jax: 0.10.0
libtpu: 0.0.40
codegen_flags: <defaults>
</compile_context>

<pallas_src>
import numpy as np
import jax
import jax.numpy as jnp
from jax.experimental import pallas as pl
from jax.experimental.pallas import tpu as pltpu


def _round_up(x, m):
    return ((x + m - 1) // m) * m


def calc_next_shape(input_shape, conv_info):
    out_channels, kernel_size, stride, padding = conv_info
    _, h, w = input_shape
    h = int((h + 2 * padding[0] - (kernel_size[0] - 1) - 1) / stride[0] + 1)
    w = int((w + 2 * padding[1] - (kernel_size[1] - 1) - 1) / stride[1] + 1)
    return (out_channels, h, w)


# ---------------------------------------------------------------------------
# Pallas kernel: fused matmul (bf16 MXU) + f32 bias + ReLU  (one conv layer)
# ---------------------------------------------------------------------------
def _matmul_bias_relu_kernel(a_ref, w_ref, b_ref, o_ref):
    # a_ref: (tm, K) bf16 patches, w_ref: (K, C_out) bf16, b_ref: (8, C_out) f32
    acc = jnp.dot(a_ref[...], w_ref[...], preferred_element_type=jnp.float32)
    bias = b_ref[...]                     # full 8-sublane (unmasked) load
    acc = acc + bias[0:1, :]              # broadcast over the M rows, f32
    o_ref[...] = jnp.maximum(acc, 0.0).astype(o_ref.dtype)


def _conv_relu_via_pallas(col, w_mat, b_tile):
    """col: (M, K) bf16 im2col patches (NHWC row order),
       w_mat: (K, C_out) bf16, b_tile: (8, C_out) f32.  Returns (M, C_out) f32."""
    M, K = col.shape
    c_out = w_mat.shape[1]

    if M <= 1024:
        # Single full-M block: full-dim block shapes are always legal, no
        # padding, no post-call slicing, no per-step pipeline overhead.
        tm, Mp = M, M
        col_p = col
    else:
        tm = 512
        Mp = _round_up(M, tm)
        col_p = jnp.pad(col, ((0, Mp - M), (0, 0))) if Mp != M else col

    grid = (Mp // tm,)
    out = pl.pallas_call(
        _matmul_bias_relu_kernel,
        out_shape=jax.ShapeDtypeStruct((Mp, c_out), jnp.float32),
        grid=grid,
        in_specs=[
            pl.BlockSpec((tm, K), lambda i: (i, 0)),       # K = full dim (no pad)
            pl.BlockSpec((K, c_out), lambda i: (0, 0)),    # weights, full block
            pl.BlockSpec((8, c_out), lambda i: (0, 0)),    # sublane-friendly bias
        ],
        out_specs=pl.BlockSpec((tm, c_out), lambda i: (i, 0)),
        compiler_params=pltpu.CompilerParams(
            dimension_semantics=("parallel",) if grid[0] > 1 else ("arbitrary",)),
    )(col_p, w_mat, b_tile)
    return out if Mp == M else out[:M]


# ---------------------------------------------------------------------------
# Plain-JAX glue: NHWC im2col (slices + lane-dim concat only, no transposes)
# ---------------------------------------------------------------------------
def _im2col_nhwc(x, kh, kw, sh, sw, ph, pw):
    """x: (N, H, W, C) -> patches (N*Ho*Wo, kh*kw*C) in (i, j, c) column order."""
    N, H, W, C = x.shape
    xp = jnp.pad(x, ((0, 0), (ph, ph), (pw, pw), (0, 0)))
    Ho = (H + 2 * ph - kh) // sh + 1
    Wo = (W + 2 * pw - kw) // sw + 1
    cols = [xp[:, i:i + sh * Ho:sh, j:j + sw * Wo:sw, :]
            for i in range(kh) for j in range(kw)]       # each (N, Ho, Wo, C)
    col = jnp.concatenate(cols, axis=-1)                 # (N, Ho, Wo, kh*kw*C)
    return col.reshape(N * Ho * Wo, kh * kw * C), Ho, Wo


# ---------------------------------------------------------------------------
# CNNBase in JAX (parameters built deterministically in-script)
# ---------------------------------------------------------------------------
class CNNBaseJax:
    def __init__(self, input_shape, hidden_shapes, key):
        self.hidden_shapes = hidden_shapes
        current_shape = input_shape
        in_channels = input_shape[0]
        self.layers = []          # f32 OIHW weights + config (used by reference)
        params = []               # bf16 matmul weights + (8, C_out) bias tiles
        cfg = []                  # static (kernel, stride, padding) per layer

        for conv_info in hidden_shapes:
            out_channels, kernel_size, stride, padding = conv_info
            kh, kw = kernel_size
            key, wk, bk = jax.random.split(key, 3)
            fan_in = in_channels * kh * kw
            w = jax.random.normal(wk, (out_channels, in_channels, kh, kw),
                                  jnp.float32) / np.sqrt(fan_in)
            b = jax.random.normal(bk, (out_channels,), jnp.float32) * 0.01
            # OIHW -> (kh, kw, C_in, C_out) -> (kh*kw*C_in, C_out): matches the
            # (i, j, c) column order produced by _im2col_nhwc.
            w_mat = jnp.transpose(w, (2, 3, 1, 0)).reshape(kh * kw * in_channels,
                                                           out_channels)
            self.layers.append({"w_oihw": w, "b": b, "kernel": kernel_size,
                                "stride": stride, "padding": padding})
            params.append((w_mat.astype(jnp.bfloat16),
                           jnp.tile(b[None, :], (8, 1))))   # (8, C_out) f32 bias
            cfg.append((kernel_size, stride, padding))
            in_channels = out_channels
            current_shape = calc_next_shape(current_shape, conv_info)

        self.output_shape = int(np.prod(current_shape))
        self._params = params
        cfg = tuple(cfg)

        def fwd(ps, x):
            lead = x.shape[:-3]
            n = int(np.prod(lead)) if len(lead) > 0 else 1
            h = x.reshape((n,) + x.shape[-3:])           # (n, C, H, W)
            h = jnp.transpose(h, (0, 2, 3, 1))           # NCHW -> NHWC (once)
            for ((kh, kw), (sh, sw), (ph, pw)), (w_mat, b_tile) in zip(cfg, ps):
                col, Ho, Wo = _im2col_nhwc(h.astype(jnp.bfloat16),
                                           kh, kw, sh, sw, ph, pw)
                out = _conv_relu_via_pallas(col, w_mat, b_tile)  # (n*Ho*Wo, C_out) f32
                h = out.reshape(n, Ho, Wo, -1)                   # stays NHWC
            h = jnp.transpose(h, (0, 3, 1, 2))           # NHWC -> NCHW (once)
            return h.reshape(lead + (-1,))               # PyTorch channel-major flatten

        self._fwd = jax.jit(fwd)

    def __call__(self, x):
        return self._fwd(self._params, x)


# ---------------------------------------------------------------------------
# Reference (lax.conv) — same bf16 operand quantization, f32 accumulation
# ---------------------------------------------------------------------------
def _reference_forward(model, x):
    lead = x.shape[:-3]
    n = int(np.prod(lead)) if len(lead) > 0 else 1
    h = x.reshape((n,) + x.shape[-3:])
    for layer in model.layers:
        (sh, sw), (ph, pw) = layer["stride"], layer["padding"]
        h = jax.lax.conv_general_dilated(
            h.astype(jnp.bfloat16), layer["w_oihw"].astype(jnp.bfloat16),
            window_strides=(sh, sw), padding=((ph, ph), (pw, pw)),
            dimension_numbers=("NCHW", "OIHW", "NCHW"),
            preferred_element_type=jnp.float32)
        h = jnp.maximum(h + layer["b"][None, :, None, None], 0.0)
    return h.reshape(lead + (-1,))


if __name__ == "__main__":
    key = jax.random.PRNGKey(0)
    key, xk = jax.random.split(key)

    # input_shape = (C, H, W) = (4, 16, 16); batch = 2
    input_shape = (4, 16, 16)
    hidden_shapes = [
        (8, (3, 3), (1, 1), (1, 1)),   # -> (8, 16, 16)
        (16, (3, 3), (2, 2), (1, 1)),  # -> (16, 8, 8)
    ]
    x = jax.random.normal(xk, (2,) + input_shape, jnp.float32)

    model = CNNBaseJax(input_shape, hidden_shapes, key)
    out = jax.block_until_ready(model(x))

    assert out.shape == (2, model.output_shape), out.shape  # (2, 16*8*8) = (2, 1024)

    ref = jax.block_until_ready(_reference_forward(model, x))
    np.testing.assert_allclose(np.asarray(out), np.asarray(ref), rtol=1e-4, atol=1e-4)

    print("KERNEL_OK")
</pallas_src>

<mosaic_0001>
module attributes {stable_mosaic.version = 11 : i64} {
  func.func @_matmul_bias_relu_kernel(%arg0: i32, %arg1: memref<512x36xbf16, #tpu.memory_space<vmem>>, %arg2: memref<36x8xbf16, #tpu.memory_space<vmem>>, %arg3: memref<8x8xf32, #tpu.memory_space<vmem>>, %arg4: memref<512x8xf32, #tpu.memory_space<vmem>>) attributes {dimension_semantics = [#tpu.dimension_semantics<arbitrary>], iteration_bounds = array<i64: 1>, scalar_prefetch = 0 : i64, scratch_operands = 0 : i64, tpu.core_type = #tpu.core_type<tc>, window_params = [{transform_indices = @transform_0, window_bounds = array<i64: 512, 36>}, {pipeline_mode = #tpu.pipeline_mode<synchronous>, transform_indices = @transform_1, window_bounds = array<i64: 36, 8>}, {pipeline_mode = #tpu.pipeline_mode<synchronous>, transform_indices = @transform_2, window_bounds = array<i64: 8, 8>}, {transform_indices = @transform_3, window_bounds = array<i64: 512, 8>}]} {
    %c0 = arith.constant 0 : index
    %c0_0 = arith.constant 0 : index
    %0 = vector.load %arg1[%c0, %c0_0] : memref<512x36xbf16, #tpu.memory_space<vmem>>, vector<512x36xbf16>
    %c0_1 = arith.constant 0 : index
    %c0_2 = arith.constant 0 : index
    %1 = vector.load %arg2[%c0_1, %c0_2] : memref<36x8xbf16, #tpu.memory_space<vmem>>, vector<36x8xbf16>
    %cst = arith.constant dense<0.000000e+00> : vector<512x8xf32>
    %2 = tpu.matmul %0, %1, %cst {dimension_numbers = #tpu.dot_dimension_numbers<[1], [0], [0], [1], [0, 0, 1, 1], [], []>} : vector<512x36xbf16>, vector<36x8xbf16>, vector<512x8xf32> -> vector<512x8xf32>
    %c0_3 = arith.constant 0 : index
    %c0_4 = arith.constant 0 : index
    %3 = vector.load %arg3[%c0_3, %c0_4] : memref<8x8xf32, #tpu.memory_space<vmem>>, vector<8x8xf32>
    %4 = vector.extract_strided_slice %3 {offsets = [0, 0], sizes = [1, 8], strides = [1, 1]} : vector<8x8xf32> to vector<1x8xf32>
    %5 = vector.broadcast %4 : vector<1x8xf32> to vector<512x8xf32>
    %6 = arith.addf %2, %5 : vector<512x8xf32>
    %cst_5 = arith.constant 0.000000e+00 : f32
    %7 = vector.broadcast %cst_5 : f32 to vector<512x8xf32>
    %8 = arith.maximumf %6, %7 : vector<512x8xf32>
    %c0_6 = arith.constant 0 : index
    %c0_7 = arith.constant 0 : index
    %9 = vector.load %arg4[%c0_6, %c0_7] : memref<512x8xf32, #tpu.memory_space<vmem>>, vector<512x8xf32>
    tpu.vector_store %arg4[%c0_6, %c0_7], %8 {strides = array<i32>} : memref<512x8xf32, #tpu.memory_space<vmem>>, vector<512x8xf32>,
    return
  }
  func.func @transform_0(%arg0: i32) -> (i32, i32) {
    %c0_i32 = arith.constant 0 : i32
    %c0_i32_0 = arith.constant 0 : i32
    return %arg0, %c0_i32 : i32, i32
  }
  func.func @transform_1(%arg0: i32) -> (i32, i32) {
    %c0_i32 = arith.constant 0 : i32
    %c0_i32_0 = arith.constant 0 : i32
    %c0_i32_1 = arith.constant 0 : i32
    return %c0_i32, %c0_i32_0 : i32, i32
  }
  func.func @transform_2(%arg0: i32) -> (i32, i32) {
    %c0_i32 = arith.constant 0 : i32
    %c0_i32_0 = arith.constant 0 : i32
    %c0_i32_1 = arith.constant 0 : i32
    return %c0_i32, %c0_i32_0 : i32, i32
  }
  func.func @transform_3(%arg0: i32) -> (i32, i32) {
    %c0_i32 = arith.constant 0 : i32
    %c0_i32_0 = arith.constant 0 : i32
    return %arg0, %c0_i32 : i32, i32
  }
}

module attributes {stable_mosaic.version = 11 : i64} {
  func.func @_matmul_bias_relu_kernel(%arg0: i32, %arg1: memref<128x72xbf16, #tpu.memory_space<vmem>>, %arg2: memref<72x16xbf16, #tpu.memory_space<vmem>>, %arg3: memref<8x16xf32, #tpu.memory_space<vmem>>, %arg4: memref<128x16xf32, #tpu.memory_space<vmem>>) attributes {dimension_semantics = [#tpu.dimension_semantics<arbitrary>], iteration_bounds = array<i64: 1>, scalar_prefetch = 0 : i64, scratch_operands = 0 : i64, tpu.core_type = #tpu.core_type<tc>, window_params = [{transform_indices = @transform_0, window_bounds = array<i64: 128, 72>}, {pipeline_mode = #tpu.pipeline_mode<synchronous>, transform_indices = @transform_1, window_bounds = array<i64: 72, 16>}, {pipeline_mode = #tpu.pipeline_mode<synchronous>, transform_indices = @transform_2, window_bounds = array<i64: 8, 16>}, {transform_indices = @transform_3, window_bounds = array<i64: 128, 16>}]} {
    %c0 = arith.constant 0 : index
    %c0_0 = arith.constant 0 : index
    %0 = vector.load %arg1[%c0, %c0_0] : memref<128x72xbf16, #tpu.memory_space<vmem>>, vector<128x72xbf16>
    %c0_1 = arith.constant 0 : index
    %c0_2 = arith.constant 0 : index
    %1 = vector.load %arg2[%c0_1, %c0_2] : memref<72x16xbf16, #tpu.memory_space<vmem>>, vector<72x16xbf16>
    %cst = arith.constant dense<0.000000e+00> : vector<128x16xf32>
    %2 = tpu.matmul %0, %1, %cst {dimension_numbers = #tpu.dot_dimension_numbers<[1], [0], [0], [1], [0, 0, 1, 1], [], []>} : vector<128x72xbf16>, vector<72x16xbf16>, vector<128x16xf32> -> vector<128x16xf32>
    %c0_3 = arith.constant 0 : index
    %c0_4 = arith.constant 0 : index
    %3 = vector.load %arg3[%c0_3, %c0_4] : memref<8x16xf32, #tpu.memory_space<vmem>>, vector<8x16xf32>
    %4 = vector.extract_strided_slice %3 {offsets = [0, 0], sizes = [1, 16], strides = [1, 1]} : vector<8x16xf32> to vector<1x16xf32>
    %5 = vector.broadcast %4 : vector<1x16xf32> to vector<128x16xf32>
    %6 = arith.addf %2, %5 : vector<128x16xf32>
    %cst_5 = arith.constant 0.000000e+00 : f32
    %7 = vector.broadcast %cst_5 : f32 to vector<128x16xf32>
    %8 = arith.maximumf %6, %7 : vector<128x16xf32>
    %c0_6 = arith.constant 0 : index
    %c0_7 = arith.constant 0 : index
    %9 = vector.load %arg4[%c0_6, %c0_7] : memref<128x16xf32, #tpu.memory_space<vmem>>, vector<128x16xf32>
    tpu.vector_store %arg4[%c0_6, %c0_7], %8 {strides = array<i32>} : memref<128x16xf32, #tpu.memory_space<vmem>>, vector<128x16xf32>,
    return
  }
  func.func @transform_0(%arg0: i32) -> (i32, i32) {
    %c0_i32 = arith.constant 0 : i32
    %c0_i32_0 = arith.constant 0 : i32
    return %arg0, %c0_i32 : i32, i32
  }
  func.func @transform_1(%arg0: i32) -> (i32, i32) {
    %c0_i32 = arith.constant 0 : i32
    %c0_i32_0 = arith.constant 0 : i32
    %c0_i32_1 = arith.constant 0 : i32
    return %c0_i32, %c0_i32_0 : i32, i32
  }
  func.func @transform_2(%arg0: i32) -> (i32, i32) {
    %c0_i32 = arith.constant 0 : i32
    %c0_i32_0 = arith.constant 0 : i32
    %c0_i32_1 = arith.constant 0 : i32
    return %c0_i32, %c0_i32_0 : i32, i32
  }
  func.func @transform_3(%arg0: i32) -> (i32, i32) {
    %c0_i32 = arith.constant 0 : i32
    %c0_i32_0 = arith.constant 0 : i32
    return %arg0, %c0_i32 : i32, i32
  }
}

</mosaic_0001>

<llo_original>
// kernel: fwd.2
$region0: #{fwd.2}
  #allocation0 [shape = 'u32[]', space=smem, size = 0x4, offset = 0x4, fixed_abs, tag = 'smem constant byte address 0x4 - core index']
  #allocation1 [shape = 'u32[144,128]{1,0:T(1,128)}', space=vmem, size = 0x12000, scoped, tag = 'internal scratch']
  %s0 = inlined_call_operand.vmem [shape: bf16[512,36], index: 0, kind: input, shape index: {}]
  %s1 = inlined_call_operand.vmem [shape: bf16[36,8], index: 1, kind: input, shape index: {}]
  %s2 = inlined_call_operand.vmem [shape: f32[8,8], index: 2, kind: input, shape index: {}]
  %s3 = inlined_call_operand.vmem [shape: f32[512,8], index: 3, kind: output, shape index: {}]
  %s4 = sld [smem:[#allocation0]]
  $region22: #{fwd.2} parent=0
    _
  %s6 = ssub.s32 1, %s4
  %s7 = scalar_select 0, %s6, %s4
  // Predicated region
  $region2: #{fwd.2} parent=0 // pred_check
    _
  $region3: #{fwd.2} parent=0 // pred_check_branch
    %9 = sbr.rel (0) target = $region5
  $region4: #{fwd.2} parent=0 // pred_region
    _
  $region5: #{fwd.2} parent=0 // pred_fallthru
    _
  // Predicated region
  $region6: #{fwd.2} parent=0 // pred_check
    _
  $region7: #{fwd.2} parent=0 // pred_check_branch
    %11 = sbr.rel (0) target = $region9
  $region8: #{fwd.2} parent=0 // pred_region
    _
  $region9: #{fwd.2} parent=0 // pred_fallthru
    _
  // Predicated region
  $region10: #{fwd.2} parent=0 // pred_check
    _
  $region11: #{fwd.2} parent=0 // pred_check_branch
    %13 = sbr.rel (0) target = $region13
  $region12: #{fwd.2} parent=0 // pred_region
    _
  $region13: #{fwd.2} parent=0 // pred_fallthru
    _
  %v15 = vld [vmem:[%s0] sm:$0xf]
  %v16 = vld [vmem:[%s0 + $0x4] sm:$0xf]
  %v17 = vld [vmem:[%s0 + $0x8] sm:$0xf]
  %v18 = vld [vmem:[%s0 + $0xc] sm:$0xf]
  %v19 = vld [vmem:[%s0 + $0x10] sm:$0xf]
  %v20 = vld [vmem:[%s0 + $0x14] sm:$0xf]
  %v21 = vld [vmem:[%s0 + $0x18] sm:$0xf]
  %v22 = vld [vmem:[%s0 + $0x1c] sm:$0xf]
  %v23 = vld [vmem:[%s0 + $0x20] sm:$0xf]
  %v24 = vld [vmem:[%s0 + $0x24] sm:$0xf]
  %v25 = vld [vmem:[%s0 + $0x28] sm:$0xf]
  %v26 = vld [vmem:[%s0 + $0x2c] sm:$0xf]
  %v27 = vld [vmem:[%s0 + $0x30] sm:$0xf]
  %v28 = vld [vmem:[%s0 + $0x34] sm:$0xf]
  %v29 = vld [vmem:[%s0 + $0x38] sm:$0xf]
  %v30 = vld [vmem:[%s0 + $0x3c] sm:$0xf]
  %v31 = vld [vmem:[%s0 + $0x40] sm:$0xf]
  %v32 = vld [vmem:[%s0 + $0x44] sm:$0xf]
  %v33 = vld [vmem:[%s0 + $0x48] sm:$0xf]
  %v34 = vld [vmem:[%s0 + $0x4c] sm:$0xf]
  %v35 = vld [vmem:[%s0 + $0x50] sm:$0xf]
  %v36 = vld [vmem:[%s0 + $0x54] sm:$0xf]
  %v37 = vld [vmem:[%s0 + $0x58] sm:$0xf]
  %v38 = vld [vmem:[%s0 + $0x5c] sm:$0xf]
  %v39 = vld [vmem:[%s0 + $0x60] sm:$0xf]
  %v40 = vld [vmem:[%s0 + $0x64] sm:$0xf]
  %v41 = vld [vmem:[%s0 + $0x68] sm:$0xf]
  %v42 = vld [vmem:[%s0 + $0x6c] sm:$0xf]
  %v43 = vld [vmem:[%s0 + $0x70] sm:$0xf]
  %v44 = vld [vmem:[%s0 + $0x74] sm:$0xf]
  %v45 = vld [vmem:[%s0 + $0x78] sm:$0xf]
  %v46 = vld [vmem:[%s0 + $0x7c] sm:$0xf]
  %v47 = vld [vmem:[%s0 + $0x80] sm:$0xf]
  %v48 = vld [vmem:[%s0 + $0x84] sm:$0xf]
  %v49 = vld [vmem:[%s0 + $0x88] sm:$0xf]
  %v50 = vld [vmem:[%s0 + $0x8c] sm:$0xf]
  %v51 = vld [vmem:[%s0 + $0x90] sm:$0xf]
  %v52 = vld [vmem:[%s0 + $0x94] sm:$0xf]
  %v53 = vld [vmem:[%s0 + $0x98] sm:$0xf]
  %v54 = vld [vmem:[%s0 + $0x9c] sm:$0xf]
  %v55 = vld [vmem:[%s0 + $0xa0] sm:$0xf]
  %v56 = vld [vmem:[%s0 + $0xa4] sm:$0xf]
  %v57 = vld [vmem:[%s0 + $0xa8] sm:$0xf]
  %v58 = vld [vmem:[%s0 + $0xac] sm:$0xf]
  %v59 = vld [vmem:[%s0 + $0xb0] sm:$0xf]
  %v60 = vld [vmem:[%s0 + $0xb4] sm:$0xf]
  %v61 = vld [vmem:[%s0 + $0xb8] sm:$0xf]
  %v62 = vld [vmem:[%s0 + $0xbc] sm:$0xf]
  %v63 = vld [vmem:[%s0 + $0xc0] sm:$0xf]
  %v64 = vld [vmem:[%s0 + $0xc4] sm:$0xf]
  %v65 = vld [vmem:[%s0 + $0xc8] sm:$0xf]
  %v66 = vld [vmem:[%s0 + $0xcc] sm:$0xf]
  %v67 = vld [vmem:[%s0 + $0xd0] sm:$0xf]
  %v68 = vld [vmem:[%s0 + $0xd4] sm:$0xf]
  %v69 = vld [vmem:[%s0 + $0xd8] sm:$0xf]
  %v70 = vld [vmem:[%s0 + $0xdc] sm:$0xf]
  %v71 = vld [vmem:[%s0 + $0xe0] sm:$0xf]
  %v72 = vld [vmem:[%s0 + $0xe4] sm:$0xf]
  %v73 = vld [vmem:[%s0 + $0xe8] sm:$0xf]
  %v74 = vld [vmem:[%s0 + $0xec] sm:$0xf]
  %v75 = vld [vmem:[%s0 + $0xf0] sm:$0xf]
  %v76 = vld [vmem:[%s0 + $0xf4] sm:$0xf]
  %v77 = vld [vmem:[%s0 + $0xf8] sm:$0xf]
  %v78 = vld [vmem:[%s0 + $0xfc] sm:$0xf]
  %v79 = vld [vmem:[%s1] sm:$0xf]
  %v80 = vld [vmem:[%s1 + $0x4] sm:$0xf]
  %v81 = vld [vmem:[%s1 + $0x8] sm:$0xf]
  %v82 = vld [vmem:[%s1 + $0xc] sm:$0xf]
  %v83 = vld [vmem:[%s1 + $0x10] sm:$0x3]
  %v84 = vld [vmem:[%s2] sm:$0xff]
  %v85 = vlaneseq
  %v86 = vshrl.u32 %v85, 7
  %v87 = vsub.s32 0, %v86
  %v88 = vrot.slane %v84, %v87
  %v153 = vunpack.c.l.b16 %v15
  %v154 = vunpack.c.l.b16 %v16
  %v155 = vunpack.c.l.b16 %v17
  %v156 = vunpack.c.l.b16 %v18
  %v157 = vunpack.c.l.b16 %v19
  %v158 = vunpack.c.l.b16 %v20
  %v159 = vunpack.c.l.b16 %v21
  %v160 = vunpack.c.l.b16 %v22
  %v161 = vunpack.c.l.b16 %v23
  %v162 = vunpack.c.l.b16 %v24
  %v163 = vunpack.c.l.b16 %v25
  %v164 = vunpack.c.l.b16 %v26
  %v165 = vunpack.c.l.b16 %v27
  %v166 = vunpack.c.l.b16 %v28
  %v167 = vunpack.c.l.b16 %v29
  %v168 = vunpack.c.l.b16 %v30
  %v169 = vunpack.c.l.b16 %v31
  %v170 = vunpack.c.l.b16 %v32
  %v171 = vunpack.c.l.b16 %v33
  %v172 = vunpack.c.l.b16 %v34
  %v173 = vunpack.c.l.b16 %v35
  %v174 = vunpack.c.l.b16 %v36
  %v175 = vunpack.c.l.b16 %v37
  %v176 = vunpack.c.l.b16 %v38
  %v177 = vunpack.c.l.b16 %v39
  %v178 = vunpack.c.l.b16 %v40
  %v179 = vunpack.c.l.b16 %v41
  %v180 = vunpack.c.l.b16 %v42
  %v181 = vunpack.c.l.b16 %v43
  %v182 = vunpack.c.l.b16 %v44
  %v183 = vunpack.c.l.b16 %v45
  %v184 = vunpack.c.l.b16 %v46
  %v185 = vunpack.c.l.b16 %v47
  %v186 = vunpack.c.l.b16 %v48
  %v187 = vunpack.c.l.b16 %v49
  %v188 = vunpack.c.l.b16 %v50
  %v189 = vunpack.c.l.b16 %v51
  %v190 = vunpack.c.l.b16 %v52
  %v191 = vunpack.c.l.b16 %v53
  %v192 = vunpack.c.l.b16 %v54
  %v193 = vunpack.c.l.b16 %v55
  %v194 = vunpack.c.l.b16 %v56
  %v195 = vunpack.c.l.b16 %v57
  %v196 = vunpack.c.l.b16 %v58
  %v197 = vunpack.c.l.b16 %v59
  %v198 = vunpack.c.l.b16 %v60
  %v199 = vunpack.c.l.b16 %v61
  %v200 = vunpack.c.l.b16 %v62
  %v201 = vunpack.c.l.b16 %v63
  %v202 = vunpack.c.l.b16 %v64
  %v203 = vunpack.c.l.b16 %v65
  %v204 = vunpack.c.l.b16 %v66
  %v205 = vunpack.c.l.b16 %v67
  %v206 = vunpack.c.l.b16 %v68
  %v207 = vunpack.c.l.b16 %v69
  %v208 = vunpack.c.l.b16 %v70
  %v209 = vunpack.c.l.b16 %v71
  %v210 = vunpack.c.l.b16 %v72
  %v211 = vunpack.c.l.b16 %v73
  %v212 = vunpack.c.l.b16 %v74
  %v213 = vunpack.c.l.b16 %v75
  %v214 = vunpack.c.l.b16 %v76
  %v215 = vunpack.c.l.b16 %v77
  %v216 = vunpack.c.l.b16 %v78
  %v217 = vpack.c.b16 %v154, %v153
  %v218 = vpack.c.b16 %v156, %v155
  %v219 = vpack.c.b16 %v158, %v157
  %v220 = vpack.c.b16 %v160, %v159
  %v221 = vpack.c.b16 %v162, %v161
  %v222 = vpack.c.b16 %v164, %v163
  %v223 = vpack.c.b16 %v166, %v165
  %v224 = vpack.c.b16 %v168, %v167
  %v225 = vpack.c.b16 %v170, %v169
  %v226 = vpack.c.b16 %v172, %v171
  %v227 = vpack.c.b16 %v174, %v173
  %v228 = vpack.c.b16 %v176, %v175
  %v229 = vpack.c.b16 %v178, %v177
  %v230 = vpack.c.b16 %v180, %v179
  %v231 = vpack.c.b16 %v182, %v181
  %v232 = vpack.c.b16 %v184, %v183
  %v233 = vpack.c.b16 %v186, %v185
  %v234 = vpack.c.b16 %v188, %v187
  %v235 = vpack.c.b16 %v190, %v189
  %v236 = vpack.c.b16 %v192, %v191
  %v237 = vpack.c.b16 %v194, %v193
  %v238 = vpack.c.b16 %v196, %v195
  %v239 = vpack.c.b16 %v198, %v197
  %v240 = vpack.c.b16 %v200, %v199
  %v241 = vpack.c.b16 %v202, %v201
  %v242 = vpack.c.b16 %v204, %v203
  %v243 = vpack.c.b16 %v206, %v205
  %v244 = vpack.c.b16 %v208, %v207
  %v245 = vpack.c.b16 %v210, %v209
  %v246 = vpack.c.b16 %v212, %v211
  %v247 = vpack.c.b16 %v214, %v213
  %v248 = vpack.c.b16 %v216, %v215
  %v254 = vunpack.c.l.b16 %v79
  %v255 = vunpack.c.l.b16 %v80
  %v256 = vunpack.c.l.b16 %v81
  %v257 = vunpack.c.l.b16 %v82
  %v258 = vunpack.c.l.b16 %v83
  %v259 = vpack.c.b16 %v255, %v254
  %v260 = vpack.c.b16 %v257, %v256
  %v261 = vpack.c.b16 %v258, %v258
  %vm264 = vcmask 293888
  %v266 = vsel %vm264, %v217, 0
  %v269 = vsel %vm264, %v218, 0
  %v272 = vsel %vm264, %v219, 0
  %v275 = vsel %vm264, %v220, 0
  %v278 = vsel %vm264, %v221, 0
  %v281 = vsel %vm264, %v222, 0
  %v284 = vsel %vm264, %v223, 0
  %v287 = vsel %vm264, %v224, 0
  %v290 = vsel %vm264, %v225, 0
  %v293 = vsel %vm264, %v226, 0
  %v296 = vsel %vm264, %v227, 0
  %v299 = vsel %vm264, %v228, 0
  %v302 = vsel %vm264, %v229, 0
  %v305 = vsel %vm264, %v230, 0
  %v308 = vsel %vm264, %v231, 0
  %v311 = vsel %vm264, %v232, 0
  %v314 = vsel %vm264, %v233, 0
  %v317 = vsel %vm264, %v234, 0
  %v320 = vsel %vm264, %v235, 0
  %v323 = vsel %vm264, %v236, 0
  %v326 = vsel %vm264, %v237, 0
  %v329 = vsel %vm264, %v238, 0
  %v332 = vsel %vm264, %v239, 0
  %v335 = vsel %vm264, %v240, 0
  %v338 = vsel %vm264, %v241, 0
  %v341 = vsel %vm264, %v242, 0
  %v344 = vsel %vm264, %v243, 0
  %v347 = vsel %vm264, %v244, 0
  %v350 = vsel %vm264, %v245, 0
  %v353 = vsel %vm264, %v246, 0
  %v356 = vsel %vm264, %v247, 0
  %v359 = vsel %vm264, %v248, 0
  %vm361 = vcmask 1041408
  %v363 = vsel %vm361, %v261, 0
  %365 = vmatprep.subr.bf16.mxu0 0
  %366 = vmatpush1.bf16.msra.mxu0 0
  %367 = vmatprep.subr.bf16.mxu0 0
  %368 = vmatpush1.bf16.msra.mxu0 0
  %369 = vmatprep.subr.bf16.mxu0 0
  %370 = vmatpush1.bf16.msra.mxu0 0
  %371 = vmatprep.subr.bf16.mxu0 0
  %372 = vmatpush1.bf16.msra.mxu0 0
  %373 = vmatprep.subr.bf16.mxu0 0
  %374 = vmatpush1.bf16.msra.mxu0 0
  %375 = vmatprep.subr.bf16.mxu0 0
  %376 = vmatpush1.bf16.msra.mxu0 %v363
  %377 = vmatprep.subr.bf16.mxu0 0
  %378 = vmatpush1.bf16.msra.mxu0 %v260
  %379 = vmatprep.subr.bf16.mxu0 0
  %380 = vmatpush1.bf16.msra.mxu0 %v259
  %381 = vmatprep.subr.bf16.mxu0 0
  %382 = vmatpush2.bf16.msra.mxu0 0
  %383 = vmatprep.subr.bf16.mxu0 0
  %384 = vmatpush2.bf16.msra.mxu0 0
  %385 = vmatprep.subr.bf16.mxu0 0
  %386 = vmatpush2.bf16.msra.mxu0 0
  %387 = vmatprep.subr.bf16.mxu0 0
  %388 = vmatpush2.bf16.msra.mxu0 0
  %389 = vmatprep.subr.bf16.mxu0 0
  %390 = vmatpush2.bf16.msra.mxu0 0
  %391 = vmatprep.subr.bf16.mxu0 0
  %392 = vmatpush2.bf16.msra.mxu0 0
  %393 = vmatprep.subr.bf16.mxu0 0
  %394 = vmatpush2.bf16.msra.mxu0 0
  %395 = vmatprep.subr.bf16.mxu0 0
  %396 = vmatpush2.bf16.msra.mxu0 0
  %397 = vmatprep.mubr.bf16.mxu0 0
  %398 = vmatmul.mubr.bf16.gmra.mxu0 %v266
  %v399 = vpop.f32.mrf.mxu0
  %v400 = vadd.f32 %v88, %v399
  %v401 = vpop.f32.mrf.mxu0
  %v402 = vpop.f32.mrf.mxu0
  %v403 = vadd.f32 %v88, %v402
  %v404 = vpop.f32.mrf.mxu0
  %405 = vmatprep.mubr.bf16.mxu0 0
  %406 = vmatmul.mubr.bf16.gmra.mxu0 %v269
  %v407 = vpop.f32.mrf.mxu0
  %v408 = vadd.f32 %v88, %v407
  %v409 = vpop.f32.mrf.mxu0
  %v410 = vpop.f32.mrf.mxu0
  %v411 = vadd.f32 %v88, %v410
  %v412 = vpop.f32.mrf.mxu0
  %413 = vmatprep.mubr.bf16.mxu0 0
  %414 = vmatmul.mubr.bf16.gmra.mxu0 %v272
  %v415 = vpop.f32.mrf.mxu0
  %v416 = vadd.f32 %v88, %v415
  %v417 = vpop.f32.mrf.mxu0
  %v418 = vpop.f32.mrf.mxu0
  %v419 = vadd.f32 %v88, %v418
  %v420 = vpop.f32.mrf.mxu0
  %421 = vmatprep.mubr.bf16.mxu0 0
  %422 = vmatmul.mubr.bf16.gmra.mxu0 %v275
  %v423 = vpop.f32.mrf.mxu0
  %v424 = vadd.f32 %v88, %v423
  %v425 = vpop.f32.mrf.mxu0
  %v426 = vpop.f32.mrf.mxu0
  %v427 = vadd.f32 %v88, %v426
  %v428 = vpop.f32.mrf.mxu0
  %429 = vmatprep.mubr.bf16.mxu0 0
  %430 = vmatmul.mubr.bf16.gmra.mxu0 %v278
  %v431 = vpop.f32.mrf.mxu0
  %v432 = vadd.f32 %v88, %v431
  %v433 = vpop.f32.mrf.mxu0
  %v434 = vpop.f32.mrf.mxu0
  %v435 = vadd.f32 %v88, %v434
  %v436 = vpop.f32.mrf.mxu0
  %437 = vmatprep.mubr.bf16.mxu0 0
  %438 = vmatmul.mubr.bf16.gmra.mxu0 %v281
  %v439 = vpop.f32.mrf.mxu0
  %v440 = vadd.f32 %v88, %v439
  %v441 = vpop.f32.mrf.mxu0
  %v442 = vpop.f32.mrf.mxu0
  %v443 = vadd.f32 %v88, %v442
  %v444 = vpop.f32.mrf.mxu0
  %445 = vmatprep.mubr.bf16.mxu0 0
  %446 = vmatmul.mubr.bf16.gmra.mxu0 %v284
  %v447 = vpop.f32.mrf.mxu0
  %v448 = vadd.f32 %v88, %v447
  %v449 = vpop.f32.mrf.mxu0
  %v450 = vpop.f32.mrf.mxu0
  %v451 = vadd.f32 %v88, %v450
  %v452 = vpop.f32.mrf.mxu0
  %453 = vmatprep.mubr.bf16.mxu0 0
  %454 = vmatmul.mubr.bf16.gmra.mxu0 %v287
  %v455 = vpop.f32.mrf.mxu0
  %v456 = vadd.f32 %v88, %v455
  %v457 = vpop.f32.mrf.mxu0
  %v458 = vpop.f32.mrf.mxu0
  %v459 = vadd.f32 %v88, %v458
  %v460 = vpop.f32.mrf.mxu0
  %461 = vmatprep.mubr.bf16.mxu0 0
  %462 = vmatmul.mubr.bf16.gmra.mxu0 %v290
  %v463 = vpop.f32.mrf.mxu0
  %v464 = vadd.f32 %v88, %v463
  %v465 = vpop.f32.mrf.mxu0
  %v466 = vpop.f32.mrf.mxu0
  %v467 = vadd.f32 %v88, %v466
  %v468 = vpop.f32.mrf.mxu0
  %469 = vmatprep.mubr.bf16.mxu0 0
  %470 = vmatmul.mubr.bf16.gmra.mxu0 %v293
  %v471 = vpop.f32.mrf.mxu0
  %v472 = vadd.f32 %v88, %v471
  %v473 = vpop.f32.mrf.mxu0
  %v474 = vpop.f32.mrf.mxu0
  %v475 = vadd.f32 %v88, %v474
  %v476 = vpop.f32.mrf.mxu0
  %477 = vmatprep.mubr.bf16.mxu0 0
  %478 = vmatmul.mubr.bf16.gmra.mxu0 %v296
  %v479 = vpop.f32.mrf.mxu0
  %v480 = vadd.f32 %v88, %v479
  %v481 = vpop.f32.mrf.mxu0
  %v482 = vpop.f32.mrf.mxu0
  %v483 = vadd.f32 %v88, %v482
  %v484 = vpop.f32.mrf.mxu0
  %485 = vmatprep.mubr.bf16.mxu0 0
  %486 = vmatmul.mubr.bf16.gmra.mxu0 %v299
  %v487 = vpop.f32.mrf.mxu0
  %v488 = vadd.f32 %v88, %v487
  %v489 = vpop.f32.mrf.mxu0
  %v490 = vpop.f32.mrf.mxu0
  %v491 = vadd.f32 %v88, %v490
  %v492 = vpop.f32.mrf.mxu0
  %493 = vmatprep.mubr.bf16.mxu0 0
  %494 = vmatmul.mubr.bf16.gmra.mxu0 %v302
  %v495 = vpop.f32.mrf.mxu0
  %v496 = vadd.f32 %v88, %v495
  %v497 = vpop.f32.mrf.mxu0
  %v498 = vpop.f32.mrf.mxu0
  %v499 = vadd.f32 %v88, %v498
  %v500 = vpop.f32.mrf.mxu0
  %501 = vmatprep.mubr.bf16.mxu0 0
  %502 = vmatmul.mubr.bf16.gmra.mxu0 %v305
  %v503 = vpop.f32.mrf.mxu0
  %v504 = vadd.f32 %v88, %v503
  %v505 = vpop.f32.mrf.mxu0
  %v506 = vpop.f32.mrf.mxu0
  %v507 = vadd.f32 %v88, %v506
  %v508 = vpop.f32.mrf.mxu0
  %509 = vmatprep.mubr.bf16.mxu0 0
  %510 = vmatmul.mubr.bf16.gmra.mxu0 %v308
  %v511 = vpop.f32.mrf.mxu0
  %v512 = vadd.f32 %v88, %v511
  %v513 = vpop.f32.mrf.mxu0
  %v514 = vpop.f32.mrf.mxu0
  %v515 = vadd.f32 %v88, %v514
  %v516 = vpop.f32.mrf.mxu0
  %517 = vmatprep.mubr.bf16.mxu0 0
  %518 = vmatmul.mubr.bf16.gmra.mxu0 %v311
  %v519 = vpop.f32.mrf.mxu0
  %v520 = vadd.f32 %v88, %v519
  %v521 = vpop.f32.mrf.mxu0
  %v522 = vpop.f32.mrf.mxu0
  %v523 = vadd.f32 %v88, %v522
  %v524 = vpop.f32.mrf.mxu0
  %525 = vmatprep.mubr.bf16.mxu0 0
  %526 = vmatmul.mubr.bf16.gmra.mxu0 %v314
  %v527 = vpop.f32.mrf.mxu0
  %v528 = vadd.f32 %v88, %v527
  %v529 = vpop.f32.mrf.mxu0
  %v530 = vpop.f32.mrf.mxu0
  %v531 = vadd.f32 %v88, %v530
  %v532 = vpop.f32.mrf.mxu0
  %533 = vmatprep.mubr.bf16.mxu0 0
  %534 = vmatmul.mubr.bf16.gmra.mxu0 %v317
  %v535 = vpop.f32.mrf.mxu0
  %v536 = vadd.f32 %v88, %v535
  %v537 = vpop.f32.mrf.mxu0
  %v538 = vpop.f32.mrf.mxu0
  %v539 = vadd.f32 %v88, %v538
  %v540 = vpop.f32.mrf.mxu0
  %541 = vmatprep.mubr.bf16.mxu0 0
  %542 = vmatmul.mubr.bf16.gmra.mxu0 %v320
  %v543 = vpop.f32.mrf.mxu0
  %v544 = vadd.f32 %v88, %v543
  %v545 = vpop.f32.mrf.mxu0
  %v546 = vpop.f32.mrf.mxu0
  %v547 = vadd.f32 %v88, %v546
  %v548 = vpop.f32.mrf.mxu0
  %549 = vmatprep.mubr.bf16.mxu0 0
  %550 = vmatmul.mubr.bf16.gmra.mxu0 %v323
  %v551 = vpop.f32.mrf.mxu0
  %v552 = vadd.f32 %v88, %v551
  %v553 = vpop.f32.mrf.mxu0
  %v554 = vpop.f32.mrf.mxu0
  %v555 = vadd.f32 %v88, %v554
  %v556 = vpop.f32.mrf.mxu0
  %557 = vmatprep.mubr.bf16.mxu0 0
  %558 = vmatmul.mubr.bf16.gmra.mxu0 %v326
  %v559 = vpop.f32.mrf.mxu0
  %v560 = vadd.f32 %v88, %v559
  %v561 = vpop.f32.mrf.mxu0
  %v562 = vpop.f32.mrf.mxu0
  %v563 = vadd.f32 %v88, %v562
  %v564 = vpop.f32.mrf.mxu0
  %565 = vmatprep.mubr.bf16.mxu0 0
  %566 = vmatmul.mubr.bf16.gmra.mxu0 %v329
  %v567 = vpop.f32.mrf.mxu0
  %v568 = vadd.f32 %v88, %v567
  %v569 = vpop.f32.mrf.mxu0
  %v570 = vpop.f32.mrf.mxu0
  %v571 = vadd.f32 %v88, %v570
  %v572 = vpop.f32.mrf.mxu0
  %573 = vmatprep.mubr.bf16.mxu0 0
  %574 = vmatmul.mubr.bf16.gmra.mxu0 %v332
  %v575 = vpop.f32.mrf.mxu0
  %v576 = vadd.f32 %v88, %v575
  %v577 = vpop.f32.mrf.mxu0
  %v578 = vpop.f32.mrf.mxu0
  %v579 = vadd.f32 %v88, %v578
  %v580 = vpop.f32.mrf.mxu0
  %581 = vmatprep.mubr.bf16.mxu0 0
  %582 = vmatmul.mubr.bf16.gmra.mxu0 %v335
  %v583 = vpop.f32.mrf.mxu0
  %v584 = vadd.f32 %v88, %v583
  %v585 = vpop.f32.mrf.mxu0
  %v586 = vpop.f32.mrf.mxu0
  %v587 = vadd.f32 %v88, %v586
  %v588 = vpop.f32.mrf.mxu0
  %589 = vmatprep.mubr.bf16.mxu0 0
  %590 = vmatmul.mubr.bf16.gmra.mxu0 %v338
  %v591 = vpop.f32.mrf.mxu0
  %v592 = vadd.f32 %v88, %v591
  %v593 = vpop.f32.mrf.mxu0
  %v594 = vpop.f32.mrf.mxu0
  %v595 = vadd.f32 %v88, %v594
  %v596 = vpop.f32.mrf.mxu0
  %597 = vmatprep.mubr.bf16.mxu0 0
  %598 = vmatmul.mubr.bf16.gmra.mxu0 %v341
  %v599 = vpop.f32.mrf.mxu0
  %v600 = vadd.f32 %v88, %v599
  %v601 = vpop.f32.mrf.mxu0
  %v602 = vpop.f32.mrf.mxu0
  %v603 = vadd.f32 %v88, %v602
  %v604 = vpop.f32.mrf.mxu0
  %605 = vmatprep.mubr.bf16.mxu0 0
  %606 = vmatmul.mubr.bf16.gmra.mxu0 %v344
  %v607 = vpop.f32.mrf.mxu0
  %v608 = vadd.f32 %v88, %v607
  %v609 = vpop.f32.mrf.mxu0
  %v610 = vpop.f32.mrf.mxu0
  %v611 = vadd.f32 %v88, %v610
  %v612 = vpop.f32.mrf.mxu0
  %613 = vmatprep.mubr.bf16.mxu0 0
  %614 = vmatmul.mubr.bf16.gmra.mxu0 %v347
  %v615 = vpop.f32.mrf.mxu0
  %v616 = vadd.f32 %v88, %v615
  %v617 = vpop.f32.mrf.mxu0
  %v618 = vpop.f32.mrf.mxu0
  %v619 = vadd.f32 %v88, %v618
  %v620 = vpop.f32.mrf.mxu0
  %621 = vmatprep.mubr.bf16.mxu0 0
  %622 = vmatmul.mubr.bf16.gmra.mxu0 %v350
  %v623 = vpop.f32.mrf.mxu0
  %v624 = vadd.f32 %v88, %v623
  %v625 = vpop.f32.mrf.mxu0
  %v626 = vpop.f32.mrf.mxu0
  %v627 = vadd.f32 %v88, %v626
  %v628 = vpop.f32.mrf.mxu0
  %629 = vmatprep.mubr.bf16.mxu0 0
  %630 = vmatmul.mubr.bf16.gmra.mxu0 %v353
  %v631 = vpop.f32.mrf.mxu0
  %v632 = vadd.f32 %v88, %v631
  %v633 = vpop.f32.mrf.mxu0
  %v634 = vpop.f32.mrf.mxu0
  %v635 = vadd.f32 %v88, %v634
  %v636 = vpop.f32.mrf.mxu0
  %637 = vmatprep.mubr.bf16.mxu0 0
  %638 = vmatmul.mubr.bf16.gmra.mxu0 %v356
  %v639 = vpop.f32.mrf.mxu0
  %v640 = vadd.f32 %v88, %v639
  %v641 = vpop.f32.mrf.mxu0
  %v642 = vpop.f32.mrf.mxu0
  %v643 = vadd.f32 %v88, %v642
  %v644 = vpop.f32.mrf.mxu0
  %645 = vmatprep.mubr.bf16.mxu0 0
  %646 = vmatmul.mubr.bf16.gmra.mxu0 %v359
  %v647 = vpop.f32.mrf.mxu0
  %v648 = vadd.f32 %v88, %v647
  %v649 = vpop.f32.mrf.mxu0
  %v650 = vpop.f32.mrf.mxu0
  %v651 = vadd.f32 %v88, %v650
  %v652 = vpop.f32.mrf.mxu0
  %653 = vdwg.mxu0
  %v654 = vmax.f32 %v400, 0.0
  %v655 = vmax.f32 %v403, 0.0
  %v656 = vmax.f32 %v408, 0.0
  %v657 = vmax.f32 %v411, 0.0
  %v658 = vmax.f32 %v416, 0.0
  %v659 = vmax.f32 %v419, 0.0
  %v660 = vmax.f32 %v424, 0.0
  %v661 = vmax.f32 %v427, 0.0
  %v662 = vmax.f32 %v432, 0.0
  %v663 = vmax.f32 %v435, 0.0
  %v664 = vmax.f32 %v440, 0.0
  %v665 = vmax.f32 %v443, 0.0
  %v666 = vmax.f32 %v448, 0.0
  %v667 = vmax.f32 %v451, 0.0
  %v668 = vmax.f32 %v456, 0.0
  %v669 = vmax.f32 %v459, 0.0
  %v670 = vmax.f32 %v464, 0.0
  %v671 = vmax.f32 %v467, 0.0
  %v672 = vmax.f32 %v472, 0.0
  %v673 = vmax.f32 %v475, 0.0
  %v674 = vmax.f32 %v480, 0.0
  %v675 = vmax.f32 %v483, 0.0
  %v676 = vmax.f32 %v488, 0.0
  %v677 = vmax.f32 %v491, 0.0
  %v678 = vmax.f32 %v496, 0.0
  %v679 = vmax.f32 %v499, 0.0
  %v680 = vmax.f32 %v504, 0.0
  %v681 = vmax.f32 %v507, 0.0
  %v682 = vmax.f32 %v512, 0.0
  %v683 = vmax.f32 %v515, 0.0
  %v684 = vmax.f32 %v520, 0.0
  %v685 = vmax.f32 %v523, 0.0
  %v686 = vmax.f32 %v528, 0.0
  %v687 = vmax.f32 %v531, 0.0
  %v688 = vmax.f32 %v536, 0.0
  %v689 = vmax.f32 %v539, 0.0
  %v690 = vmax.f32 %v544, 0.0
  %v691 = vmax.f32 %v547, 0.0
  %v692 = vmax.f32 %v552, 0.0
  %v693 = vmax.f32 %v555, 0.0
  %v694 = vmax.f32 %v560, 0.0
  %v695 = vmax.f32 %v563, 0.0
  %v696 = vmax.f32 %v568, 0.0
  %v697 = vmax.f32 %v571, 0.0
  %v698 = vmax.f32 %v576, 0.0
  %v699 = vmax.f32 %v579, 0.0
  %v700 = vmax.f32 %v584, 0.0
  %v701 = vmax.f32 %v587, 0.0
  %v702 = vmax.f32 %v592, 0.0
  %v703 = vmax.f32 %v595, 0.0
  %v704 = vmax.f32 %v600, 0.0
  %v705 = vmax.f32 %v603, 0.0
  %v706 = vmax.f32 %v608, 0.0
  %v707 = vmax.f32 %v611, 0.0
  %v708 = vmax.f32 %v616, 0.0
  %v709 = vmax.f32 %v619, 0.0
  %v710 = vmax.f32 %v624, 0.0
  %v711 = vmax.f32 %v627, 0.0
  %v712 = vmax.f32 %v632, 0.0
  %v713 = vmax.f32 %v635, 0.0
  %v714 = vmax.f32 %v640, 0.0
  %v715 = vmax.f32 %v643, 0.0
  %v716 = vmax.f32 %v648, 0.0
  %v717 = vmax.f32 %v651, 0.0
  %vm718 = vcmask 64512
  %719 = vst.msk [vmem:[%s3] sm:$0xff] %vm718, %v654
  %720 = vst.msk [vmem:[%s3 + $0x8] sm:$0xff] %vm718, %v655
  %721 = vst.msk [vmem:[%s3 + $0x10] sm:$0xff] %vm718, %v656
  %722 = vst.msk [vmem:[%s3 + $0x18] sm:$0xff] %vm718, %v657
  %723 = vst.msk [vmem:[%s3 + $0x20] sm:$0xff] %vm718, %v658
  %724 = vst.msk [vmem:[%s3 + $0x28] sm:$0xff] %vm718, %v659
  %725 = vst.msk [vmem:[%s3 + $0x30] sm:$0xff] %vm718, %v660
  %726 = vst.msk [vmem:[%s3 + $0x38] sm:$0xff] %vm718, %v661
  %727 = vst.msk [vmem:[%s3 + $0x40] sm:$0xff] %vm718, %v662
  %728 = vst.msk [vmem:[%s3 + $0x48] sm:$0xff] %vm718, %v663
  %729 = vst.msk [vmem:[%s3 + $0x50] sm:$0xff] %vm718, %v664
  %730 = vst.msk [vmem:[%s3 + $0x58] sm:$0xff] %vm718, %v665
  %731 = vst.msk [vmem:[%s3 + $0x60] sm:$0xff] %vm718, %v666
  %732 = vst.msk [vmem:[%s3 + $0x68] sm:$0xff] %vm718, %v667
  %733 = vst.msk [vmem:[%s3 + $0x70] sm:$0xff] %vm718, %v668
  %734 = vst.msk [vmem:[%s3 + $0x78] sm:$0xff] %vm718, %v669
  %735 = vst.msk [vmem:[%s3 + $0x80] sm:$0xff] %vm718, %v670
  %736 = vst.msk [vmem:[%s3 + $0x88] sm:$0xff] %vm718, %v671
  %737 = vst.msk [vmem:[%s3 + $0x90] sm:$0xff] %vm718, %v672
  %738 = vst.msk [vmem:[%s3 + $0x98] sm:$0xff] %vm718, %v673
  %739 = vst.msk [vmem:[%s3 + $0xa0] sm:$0xff] %vm718, %v674
  %740 = vst.msk [vmem:[%s3 + $0xa8] sm:$0xff] %vm718, %v675
  %741 = vst.msk [vmem:[%s3 + $0xb0] sm:$0xff] %vm718, %v676
  %742 = vst.msk [vmem:[%s3 + $0xb8] sm:$0xff] %vm718, %v677
  %743 = vst.msk [vmem:[%s3 + $0xc0] sm:$0xff] %vm718, %v678
  %744 = vst.msk [vmem:[%s3 + $0xc8] sm:$0xff] %vm718, %v679
  %745 = vst.msk [vmem:[%s3 + $0xd0] sm:$0xff] %vm718, %v680
  %746 = vst.msk [vmem:[%s3 + $0xd8] sm:$0xff] %vm718, %v681
  %747 = vst.msk [vmem:[%s3 + $0xe0] sm:$0xff] %vm718, %v682
  %748 = vst.msk [vmem:[%s3 + $0xe8] sm:$0xff] %vm718, %v683
  %749 = vst.msk [vmem:[%s3 + $0xf0] sm:$0xff] %vm718, %v684
  %750 = vst.msk [vmem:[%s3 + $0xf8] sm:$0xff] %vm718, %v685
  %751 = vst.msk [vmem:[%s3 + $0x100] sm:$0xff] %vm718, %v686
  %752 = vst.msk [vmem:[%s3 + $0x108] sm:$0xff] %vm718, %v687
  %753 = vst.msk [vmem:[%s3 + $0x110] sm:$0xff] %vm718, %v688
  %754 = vst.msk [vmem:[%s3 + $0x118] sm:$0xff] %vm718, %v689
  %755 = vst.msk [vmem:[%s3 + $0x120] sm:$0xff] %vm718, %v690
  %756 = vst.msk [vmem:[%s3 + $0x128] sm:$0xff] %vm718, %v691
  %757 = vst.msk [vmem:[%s3 + $0x130] sm:$0xff] %vm718, %v692
  %758 = vst.msk [vmem:[%s3 + $0x138] sm:$0xff] %vm718, %v693
  %759 = vst.msk [vmem:[%s3 + $0x140] sm:$0xff] %vm718, %v694
  %760 = vst.msk [vmem:[%s3 + $0x148] sm:$0xff] %vm718, %v695
  %761 = vst.msk [vmem:[%s3 + $0x150] sm:$0xff] %vm718, %v696
  %762 = vst.msk [vmem:[%s3 + $0x158] sm:$0xff] %vm718, %v697
  %763 = vst.msk [vmem:[%s3 + $0x160] sm:$0xff] %vm718, %v698
  %764 = vst.msk [vmem:[%s3 + $0x168] sm:$0xff] %vm718, %v699
  %765 = vst.msk [vmem:[%s3 + $0x170] sm:$0xff] %vm718, %v700
  %766 = vst.msk [vmem:[%s3 + $0x178] sm:$0xff] %vm718, %v701
  %767 = vst.msk [vmem:[%s3 + $0x180] sm:$0xff] %vm718, %v702
  %768 = vst.msk [vmem:[%s3 + $0x188] sm:$0xff] %vm718, %v703
  %769 = vst.msk [vmem:[%s3 + $0x190] sm:$0xff] %vm718, %v704
  %770 = vst.msk [vmem:[%s3 + $0x198] sm:$0xff] %vm718, %v705
  %771 = vst.msk [vmem:[%s3 + $0x1a0] sm:$0xff] %vm718, %v706
  %772 = vst.msk [vmem:[%s3 + $0x1a8] sm:$0xff] %vm718, %v707
  %773 = vst.msk [vmem:[%s3 + $0x1b0] sm:$0xff] %vm718, %v708
  %774 = vst.msk [vmem:[%s3 + $0x1b8] sm:$0xff] %vm718, %v709
  %775 = vst.msk [vmem:[%s3 + $0x1c0] sm:$0xff] %vm718, %v710
  %776 = vst.msk [vmem:[%s3 + $0x1c8] sm:$0xff] %vm718, %v711
  %777 = vst.msk [vmem:[%s3 + $0x1d0] sm:$0xff] %vm718, %v712
  %778 = vst.msk [vmem:[%s3 + $0x1d8] sm:$0xff] %vm718, %v713
  %779 = vst.msk [vmem:[%s3 + $0x1e0] sm:$0xff] %vm718, %v714
  %780 = vst.msk [vmem:[%s3 + $0x1e8] sm:$0xff] %vm718, %v715
  %781 = vst.msk [vmem:[%s3 + $0x1f0] sm:$0xff] %vm718, %v716
  %782 = vst.msk [vmem:[%s3 + $0x1f8] sm:$0xff] %vm718, %v717
  // Predicated region
  $region14: #{fwd.2} parent=0 // pred_check
    _
  $region15: #{fwd.2} parent=0 // pred_check_branch
    %784 = sbr.rel (0) target = $region17
  $region16: #{fwd.2} parent=0 // pred_region
    _
  $region17: #{fwd.2} parent=0 // pred_fallthru
    _
  // Predicated region
  $region18: #{fwd.2} parent=0 // pred_check
    _
  $region19: #{fwd.2} parent=0 // pred_check_branch
    %786 = sbr.rel (0) target = $region21
  $region20: #{fwd.2} parent=0 // pred_region
    _
  $region21: #{fwd.2} parent=0 // pred_fallthru
    _

// kernel: fwd.3
$region0: #{fwd.3}
  #allocation0 [shape = 'u32[]', space=smem, size = 0x4, offset = 0x4, fixed_abs, tag = 'smem constant byte address 0x4 - core index']
  #allocation1 [shape = 'u32[144,128]{1,0:T(1,128)}', space=vmem, size = 0x12000, scoped, tag = 'internal scratch']
  %s0 = inlined_call_operand.vmem [shape: bf16[128,72], index: 0, kind: input, shape index: {}]
  %s1 = inlined_call_operand.vmem [shape: bf16[72,16], index: 1, kind: input, shape index: {}]
  %s2 = inlined_call_operand.vmem [shape: f32[8,16], index: 2, kind: input, shape index: {}]
  %s3 = inlined_call_operand.vmem [shape: f32[128,16], index: 3, kind: output, shape index: {}]
  %s4 = sld [smem:[#allocation0]]
  $region22: #{fwd.3} parent=0
    _
  %s6 = ssub.s32 1, %s4
  %s7 = scalar_select 0, %s6, %s4
  // Predicated region
  $region2: #{fwd.3} parent=0 // pred_check
    _
  $region3: #{fwd.3} parent=0 // pred_check_branch
    %9 = sbr.rel (0) target = $region5
  $region4: #{fwd.3} parent=0 // pred_region
    _
  $region5: #{fwd.3} parent=0 // pred_fallthru
    _
  // Predicated region
  $region6: #{fwd.3} parent=0 // pred_check
    _
  $region7: #{fwd.3} parent=0 // pred_check_branch
    %11 = sbr.rel (0) target = $region9
  $region8: #{fwd.3} parent=0 // pred_region
    _
  $region9: #{fwd.3} parent=0 // pred_fallthru
    _
  // Predicated region
  $region10: #{fwd.3} parent=0 // pred_check
    _
  $region11: #{fwd.3} parent=0 // pred_check_branch
    %13 = sbr.rel (0) target = $region13
  $region12: #{fwd.3} parent=0 // pred_region
    _
  $region13: #{fwd.3} parent=0 // pred_fallthru
    _
  %v15 = vld [vmem:[%s0] sm:$0xf]
  %v16 = vld [vmem:[%s0 + $0x4] sm:$0xf]
  %v17 = vld [vmem:[%s0 + $0x8] sm:$0xf]
  %v18 = vld [vmem:[%s0 + $0xc] sm:$0xf]
  %v19 = vld [vmem:[%s0 + $0x10] sm:$0xf]
  %v20 = vld [vmem:[%s0 + $0x14] sm:$0xf]
  %v21 = vld [vmem:[%s0 + $0x18] sm:$0xf]
  %v22 = vld [vmem:[%s0 + $0x1c] sm:$0xf]
  %v23 = vld [vmem:[%s0 + $0x20] sm:$0xf]
  %v24 = vld [vmem:[%s0 + $0x24] sm:$0xf]
  %v25 = vld [vmem:[%s0 + $0x28] sm:$0xf]
  %v26 = vld [vmem:[%s0 + $0x2c] sm:$0xf]
  %v27 = vld [vmem:[%s0 + $0x30] sm:$0xf]
  %v28 = vld [vmem:[%s0 + $0x34] sm:$0xf]
  %v29 = vld [vmem:[%s0 + $0x38] sm:$0xf]
  %v30 = vld [vmem:[%s0 + $0x3c] sm:$0xf]
  %v31 = vld [vmem:[%s1] sm:$0xf]
  %v32 = vld [vmem:[%s1 + $0x4] sm:$0xf]
  %v33 = vld [vmem:[%s1 + $0x8] sm:$0xf]
  %v34 = vld [vmem:[%s1 + $0xc] sm:$0xf]
  %v35 = vld [vmem:[%s1 + $0x10] sm:$0xf]
  %v36 = vld [vmem:[%s1 + $0x14] sm:$0xf]
  %v37 = vld [vmem:[%s1 + $0x18] sm:$0xf]
  %v38 = vld [vmem:[%s1 + $0x1c] sm:$0xf]
  %v39 = vld [vmem:[%s1 + $0x20] sm:$0xf]
  %v40 = vld [vmem:[%s2] sm:$0xff]
  %v41 = vlaneseq
  %v42 = vshrl.u32 %v41, 7
  %v43 = vsub.s32 0, %v42
  %v44 = vrot.slane %v40, %v43
  %v61 = vunpack.c.l.b16 %v15
  %v62 = vunpack.c.l.b16 %v16
  %v63 = vunpack.c.l.b16 %v17
  %v64 = vunpack.c.l.b16 %v18
  %v65 = vunpack.c.l.b16 %v19
  %v66 = vunpack.c.l.b16 %v20
  %v67 = vunpack.c.l.b16 %v21
  %v68 = vunpack.c.l.b16 %v22
  %v69 = vunpack.c.l.b16 %v23
  %v70 = vunpack.c.l.b16 %v24
  %v71 = vunpack.c.l.b16 %v25
  %v72 = vunpack.c.l.b16 %v26
  %v73 = vunpack.c.l.b16 %v27
  %v74 = vunpack.c.l.b16 %v28
  %v75 = vunpack.c.l.b16 %v29
  %v76 = vunpack.c.l.b16 %v30
  %v77 = vpack.c.b16 %v62, %v61
  %v78 = vpack.c.b16 %v64, %v63
  %v79 = vpack.c.b16 %v66, %v65
  %v80 = vpack.c.b16 %v68, %v67
  %v81 = vpack.c.b16 %v70, %v69
  %v82 = vpack.c.b16 %v72, %v71
  %v83 = vpack.c.b16 %v74, %v73
  %v84 = vpack.c.b16 %v76, %v75
  %v94 = vunpack.c.l.b16 %v31
  %v95 = vunpack.c.l.b16 %v32
  %v96 = vunpack.c.l.b16 %v33
  %v97 = vunpack.c.l.b16 %v34
  %v98 = vunpack.c.l.b16 %v35
  %v99 = vunpack.c.l.b16 %v36
  %v100 = vunpack.c.l.b16 %v37
  %v101 = vunpack.c.l.b16 %v38
  %v102 = vunpack.c.l.b16 %v39
  %v103 = vpack.c.b16 %v95, %v94
  %v104 = vpack.c.b16 %v97, %v96
  %v105 = vpack.c.b16 %v99, %v98
  %v106 = vpack.c.b16 %v101, %v100
  %v107 = vpack.c.b16 %v102, %v102
  %vm112 = vcmask 588800
  %v114 = vsel %vm112, %v77, 0
  %v117 = vsel %vm112, %v78, 0
  %v120 = vsel %vm112, %v79, 0
  %v123 = vsel %vm112, %v80, 0
  %v126 = vsel %vm112, %v81, 0
  %v129 = vsel %vm112, %v82, 0
  %v132 = vsel %vm112, %v83, 0
  %v135 = vsel %vm112, %v84, 0
  %vm137 = vcmask 1043456
  %v139 = vsel %vm137, %v107, 0
  %141 = vmatprep.subr.bf16.mxu0 0
  %142 = vmatpush1.bf16.msra.mxu0 0
  %143 = vmatprep.subr.bf16.mxu0 0
  %144 = vmatpush1.bf16.msra.mxu0 0
  %145 = vmatprep.subr.bf16.mxu0 0
  %146 = vmatpush1.bf16.msra.mxu0 0
  %147 = vmatprep.subr.bf16.mxu0 0
  %148 = vmatpush1.bf16.msra.mxu0 %v139
  %149 = vmatprep.subr.bf16.mxu0 0
  %150 = vmatpush1.bf16.msra.mxu0 %v106
  %151 = vmatprep.subr.bf16.mxu0 0
  %152 = vmatpush1.bf16.msra.mxu0 %v105
  %153 = vmatprep.subr.bf16.mxu0 0
  %154 = vmatpush1.bf16.msra.mxu0 %v104
  %155 = vmatprep.subr.bf16.mxu0 0
  %156 = vmatpush1.bf16.msra.mxu0 %v103
  %157 = vmatprep.subr.bf16.mxu0 0
  %158 = vmatpush2.bf16.msra.mxu0 0
  %159 = vmatprep.subr.bf16.mxu0 0
  %160 = vmatpush2.bf16.msra.mxu0 0
  %161 = vmatprep.subr.bf16.mxu0 0
  %162 = vmatpush2.bf16.msra.mxu0 0
  %163 = vmatprep.subr.bf16.mxu0 0
  %164 = vmatpush2.bf16.msra.mxu0 0
  %165 = vmatprep.subr.bf16.mxu0 0
  %166 = vmatpush2.bf16.msra.mxu0 0
  %167 = vmatprep.subr.bf16.mxu0 0
  %168 = vmatpush2.bf16.msra.mxu0 0
  %169 = vmatprep.subr.bf16.mxu0 0
  %170 = vmatpush2.bf16.msra.mxu0 0
  %171 = vmatprep.subr.bf16.mxu0 0
  %172 = vmatpush2.bf16.msra.mxu0 0
  %173 = vmatprep.mubr.bf16.mxu0 0
  %174 = vmatmul.mubr.bf16.gmra.mxu0 %v114
  %v175 = vpop.f32.mrf.mxu0
  %v176 = vadd.f32 %v44, %v175
  %v177 = vpop.f32.mrf.mxu0
  %v178 = vpop.f32.mrf.mxu0
  %v179 = vadd.f32 %v44, %v178
  %v180 = vpop.f32.mrf.mxu0
  %181 = vmatprep.mubr.bf16.mxu0 0
  %182 = vmatmul.mubr.bf16.gmra.mxu0 %v117
  %v183 = vpop.f32.mrf.mxu0
  %v184 = vadd.f32 %v44, %v183
  %v185 = vpop.f32.mrf.mxu0
  %v186 = vpop.f32.mrf.mxu0
  %v187 = vadd.f32 %v44, %v186
  %v188 = vpop.f32.mrf.mxu0
  %189 = vmatprep.mubr.bf16.mxu0 0
  %190 = vmatmul.mubr.bf16.gmra.mxu0 %v120
  %v191 = vpop.f32.mrf.mxu0
  %v192 = vadd.f32 %v44, %v191
  %v193 = vpop.f32.mrf.mxu0
  %v194 = vpop.f32.mrf.mxu0
  %v195 = vadd.f32 %v44, %v194
  %v196 = vpop.f32.mrf.mxu0
  %197 = vmatprep.mubr.bf16.mxu0 0
  %198 = vmatmul.mubr.bf16.gmra.mxu0 %v123
  %v199 = vpop.f32.mrf.mxu0
  %v200 = vadd.f32 %v44, %v199
  %v201 = vpop.f32.mrf.mxu0
  %v202 = vpop.f32.mrf.mxu0
  %v203 = vadd.f32 %v44, %v202
  %v204 = vpop.f32.mrf.mxu0
  %205 = vmatprep.mubr.bf16.mxu0 0
  %206 = vmatmul.mubr.bf16.gmra.mxu0 %v126
  %v207 = vpop.f32.mrf.mxu0
  %v208 = vadd.f32 %v44, %v207
  %v209 = vpop.f32.mrf.mxu0
  %v210 = vpop.f32.mrf.mxu0
  %v211 = vadd.f32 %v44, %v210
  %v212 = vpop.f32.mrf.mxu0
  %213 = vmatprep.mubr.bf16.mxu0 0
  %214 = vmatmul.mubr.bf16.gmra.mxu0 %v129
  %v215 = vpop.f32.mrf.mxu0
  %v216 = vadd.f32 %v44, %v215
  %v217 = vpop.f32.mrf.mxu0
  %v218 = vpop.f32.mrf.mxu0
  %v219 = vadd.f32 %v44, %v218
  %v220 = vpop.f32.mrf.mxu0
  %221 = vmatprep.mubr.bf16.mxu0 0
  %222 = vmatmul.mubr.bf16.gmra.mxu0 %v132
  %v223 = vpop.f32.mrf.mxu0
  %v224 = vadd.f32 %v44, %v223
  %v225 = vpop.f32.mrf.mxu0
  %v226 = vpop.f32.mrf.mxu0
  %v227 = vadd.f32 %v44, %v226
  %v228 = vpop.f32.mrf.mxu0
  %229 = vmatprep.mubr.bf16.mxu0 0
  %230 = vmatmul.mubr.bf16.gmra.mxu0 %v135
  %v231 = vpop.f32.mrf.mxu0
  %v232 = vadd.f32 %v44, %v231
  %v233 = vpop.f32.mrf.mxu0
  %v234 = vpop.f32.mrf.mxu0
  %v235 = vadd.f32 %v44, %v234
  %v236 = vpop.f32.mrf.mxu0
  %237 = vdwg.mxu0
  %v238 = vmax.f32 %v176, 0.0
  %v239 = vmax.f32 %v179, 0.0
  %v240 = vmax.f32 %v184, 0.0
  %v241 = vmax.f32 %v187, 0.0
  %v242 = vmax.f32 %v192, 0.0
  %v243 = vmax.f32 %v195, 0.0
  %v244 = vmax.f32 %v200, 0.0
  %v245 = vmax.f32 %v203, 0.0
  %v246 = vmax.f32 %v208, 0.0
  %v247 = vmax.f32 %v211, 0.0
  %v248 = vmax.f32 %v216, 0.0
  %v249 = vmax.f32 %v219, 0.0
  %v250 = vmax.f32 %v224, 0.0
  %v251 = vmax.f32 %v227, 0.0
  %v252 = vmax.f32 %v232, 0.0
  %v253 = vmax.f32 %v235, 0.0
  %vm254 = vcmask 130048
  %255 = vst.msk [vmem:[%s3] sm:$0xff] %vm254, %v238
  %256 = vst.msk [vmem:[%s3 + $0x8] sm:$0xff] %vm254, %v239
  %257 = vst.msk [vmem:[%s3 + $0x10] sm:$0xff] %vm254, %v240
  %258 = vst.msk [vmem:[%s3 + $0x18] sm:$0xff] %vm254, %v241
  %259 = vst.msk [vmem:[%s3 + $0x20] sm:$0xff] %vm254, %v242
  %260 = vst.msk [vmem:[%s3 + $0x28] sm:$0xff] %vm254, %v243
  %261 = vst.msk [vmem:[%s3 + $0x30] sm:$0xff] %vm254, %v244
  %262 = vst.msk [vmem:[%s3 + $0x38] sm:$0xff] %vm254, %v245
  %263 = vst.msk [vmem:[%s3 + $0x40] sm:$0xff] %vm254, %v246
  %264 = vst.msk [vmem:[%s3 + $0x48] sm:$0xff] %vm254, %v247
  %265 = vst.msk [vmem:[%s3 + $0x50] sm:$0xff] %vm254, %v248
  %266 = vst.msk [vmem:[%s3 + $0x58] sm:$0xff] %vm254, %v249
  %267 = vst.msk [vmem:[%s3 + $0x60] sm:$0xff] %vm254, %v250
  %268 = vst.msk [vmem:[%s3 + $0x68] sm:$0xff] %vm254, %v251
  %269 = vst.msk [vmem:[%s3 + $0x70] sm:$0xff] %vm254, %v252
  %270 = vst.msk [vmem:[%s3 + $0x78] sm:$0xff] %vm254, %v253
  // Predicated region
  $region14: #{fwd.3} parent=0 // pred_check
    _
  $region15: #{fwd.3} parent=0 // pred_check_branch
    %272 = sbr.rel (0) target = $region17
  $region16: #{fwd.3} parent=0 // pred_region
    _
  $region17: #{fwd.3} parent=0 // pred_fallthru
    _
  // Predicated region
  $region18: #{fwd.3} parent=0 // pred_check
    _
  $region19: #{fwd.3} parent=0 // pred_check_branch
    %274 = sbr.rel (0) target = $region21
  $region20: #{fwd.3} parent=0 // pred_region
    _
  $region21: #{fwd.3} parent=0 // pred_fallthru
    _

</llo_original>
